<compile_context>
chip_gen: v7x
topology: tpu7x:2x2x1
jax: 0.10.0
libtpu: 0.0.40
codegen_flags: <defaults>
</compile_context>

<pallas_src>
import jax
import jax.numpy as jnp
from jax.experimental import pallas as pl
from jax.experimental.pallas import tpu as pltpu


def _identity_kernel(x_ref, o_ref):
    # Elementwise identity — the entire (degenerate) forward pass.
    o_ref[...] = x_ref[...]


def _round_up(v: int, m: int) -> int:
    return ((v + m - 1) // m) * m


def resnet_generator_forward(x: jax.Array, *, min_pallas_bytes: int = 1 << 20) -> jax.Array:
    """Pallas implementation of Resnet_Generator.forward (stub -> identity).

    TODO(synk): reference forward() is empty (`pass`) and __init__ defines no
    layers, so only an identity pass-through of `x` is implemented here.
    """
    orig_shape = x.shape
    total = int(x.size)
    itemsize = jnp.dtype(x.dtype).itemsize

    if total == 0 or total * itemsize < min_pallas_bytes:
        # Kernel launch + pipeline prologue overhead exceeds the cost of tiny
        # copies; let XLA handle them (identity is free under jit anyway).
        return x

    flat = x.reshape(total)

    # Lane-dense last dim: a multiple of 128 (prefer 512) so stores are
    # unmasked full-lane vst instead of masked vst.msk on a 16-wide W axis.
    lane = None
    for cand in (512, 256, 128):
        if total % cand == 0:
            lane = cand
            break
    if lane is None:
        lane = 128
        padded_total = _round_up(total, lane)
        flat = jnp.pad(flat, (0, padded_total - total))
    else:
        padded_total = total
    rows = padded_total // lane

    x2d = flat.reshape(rows, lane)

    # Block rows: sublane-aligned, sized so one block is ~2 MiB.  With double
    # buffering on both input and output (4 buffers) that is ~8 MiB of VMEM —
    # safe under every chip's default scoped VMEM limit (v5e 16 / v6e+v7x 32 MiB).
    sublane_align = 8 * max(1, 4 // itemsize)  # 8 for f32, 16 for bf16, ...
    max_block_rows = max(
        sublane_align,
        ((2 << 20) // (lane * itemsize)) // sublane_align * sublane_align,
    )
    if rows <= sublane_align:
        row_tile = rows  # block equals the full dim -> always a valid shape
    else:
        row_tile = min(_round_up(rows, sublane_align), max_block_rows)

    grid = (pl.cdiv(rows, row_tile),)

    out2d = pl.pallas_call(
        _identity_kernel,
        out_shape=jax.ShapeDtypeStruct((rows, lane), x.dtype),
        grid_spec=pltpu.PrefetchScalarGridSpec(
            num_scalar_prefetch=0,
            grid=grid,
            in_specs=[pl.BlockSpec((row_tile, lane), lambda i: (i, 0))],
            out_specs=pl.BlockSpec((row_tile, lane), lambda i: (i, 0)),
        ),
        # Identity copy: alias the input buffer to the output so that, when
        # the caller donates the input, no HBM read+write traffic is needed.
        input_output_aliases={0: 0},
        compiler_params=pltpu.CompilerParams(
            dimension_semantics=("parallel",),  # shards grid across v7x's 2 TCs
        ),
    )(x2d)

    out_flat = out2d.reshape(padded_total)
    if padded_total != total:
        out_flat = out_flat[:total]
    return out_flat.reshape(orig_shape)


if __name__ == "__main__":
    import numpy as np

    key = jax.random.PRNGKey(0)
    # Small NCHW input consistent with a CIFAR-style generator stub.
    x = jax.random.normal(key, (2, 4, 16, 16), dtype=jnp.float32)
    x_host = np.asarray(x)  # host copy for the check; device x is donated below

    # Donate the input so the aliased identity becomes a true in-place no-op.
    # min_pallas_bytes=0 forces the Pallas path even at this tiny test size.
    fwd = jax.jit(
        lambda a: resnet_generator_forward(a, min_pallas_bytes=0),
        donate_argnums=(0,),
    )
    y = jax.block_until_ready(fwd(x))

    # Sanity check: identity semantics (the only defined behavior of the stub).
    assert y.shape == x_host.shape and y.dtype == x_host.dtype
    assert bool(jnp.allclose(np.asarray(y), x_host))
    print("KERNEL_OK")
</pallas_src>

<mosaic_0001>
module attributes {stable_mosaic.version = 11 : i64} {
  func.func @_identity_kernel(%arg0: i32, %arg1: memref<4x512xf32, #tpu.memory_space<vmem>>, %arg2: memref<4x512xf32, #tpu.memory_space<vmem>>) attributes {dimension_semantics = [#tpu.dimension_semantics<parallel>], iteration_bounds = array<i64: 1>, scalar_prefetch = 0 : i64, scratch_operands = 0 : i64, tpu.core_type = #tpu.core_type<tc>, window_params = [{transform_indices = @transform_0, window_bounds = array<i64: 4, 512>}, {transform_indices = @transform_1, window_bounds = array<i64: 4, 512>}]} {
    %c0 = arith.constant 0 : index
    %c0_0 = arith.constant 0 : index
    %0 = vector.load %arg1[%c0, %c0_0] : memref<4x512xf32, #tpu.memory_space<vmem>>, vector<4x512xf32>
    %c0_1 = arith.constant 0 : index
    %c0_2 = arith.constant 0 : index
    %1 = vector.load %arg2[%c0_1, %c0_2] : memref<4x512xf32, #tpu.memory_space<vmem>>, vector<4x512xf32>
    tpu.vector_store %arg2[%c0_1, %c0_2], %0 {strides = array<i32>} : memref<4x512xf32, #tpu.memory_space<vmem>>, vector<4x512xf32>,
    return
  }
  func.func @transform_0(%arg0: i32) -> (i32, i32) {
    %c0_i32 = arith.constant 0 : i32
    %c0_i32_0 = arith.constant 0 : i32
    return %arg0, %c0_i32 : i32, i32
  }
  func.func @transform_1(%arg0: i32) -> (i32, i32) {
    %c0_i32 = arith.constant 0 : i32
    %c0_i32_0 = arith.constant 0 : i32
    return %arg0, %c0_i32 : i32, i32
  }
}

</mosaic_0001>

<llo_original>
// kernel: _lambda_.1
$region0: #{_lambda_.1}
  #allocation0 [shape = 'u32[]', space=smem, size = 0x4, offset = 0x4, fixed_abs, tag = 'smem constant byte address 0x4 - core index']
  #allocation1 [shape = 'u32[144,128]{1,0:T(1,128)}', space=vmem, size = 0x12000, scoped, tag = 'internal scratch']
  %s0 = inlined_call_operand.vmem [shape: f32[4,512], index: 0, kind: input, shape index: {}, may-alias: {0,1}]
  %s1 = inlined_call_operand.vmem [shape: f32[4,512], index: 1, kind: output, shape index: {}, may-alias: {0,1}]
  %s2 = sld [smem:[#allocation0]]
  $region14: #{_lambda_.1} parent=0
    _
  %s4 = ssub.s32 1, %s2
  %s5 = scalar_select 0, %s4, %s2
  // Predicated region
  $region2: #{_lambda_.1} parent=0 // pred_check
    _
  $region3: #{_lambda_.1} parent=0 // pred_check_branch
    %7 = sbr.rel (0) target = $region5
  $region4: #{_lambda_.1} parent=0 // pred_region
    _
  $region5: #{_lambda_.1} parent=0 // pred_fallthru
    _
  %v8 = vld [vmem:[%s0] sm:$0xff]
  %v9 = vld [vmem:[%s0 + $0x8] sm:$0xff]
  %10 = vst [vmem:[%s1] sm:$0xff] %v8
  %11 = vst [vmem:[%s1 + $0x8] sm:$0xff] %v9
  // Predicated region
  $region6: #{_lambda_.1} parent=0 // pred_check
    _
  $region7: #{_lambda_.1} parent=0 // pred_check_branch
    %13 = sbr.rel (0) target = $region9
  $region8: #{_lambda_.1} parent=0 // pred_region
    _
  $region9: #{_lambda_.1} parent=0 // pred_fallthru
    _
  // Predicated region
  $region10: #{_lambda_.1} parent=0 // pred_check
    _
  $region11: #{_lambda_.1} parent=0 // pred_check_branch
    %15 = sbr.rel (0) target = $region13
  $region12: #{_lambda_.1} parent=0 // pred_region
    _
  $region13: #{_lambda_.1} parent=0 // pred_fallthru
    _

</llo_original>
